<compile_context>
chip_gen: v7x
topology: tpu7x:2x2x1
jax: 0.10.0
libtpu: 0.0.40
codegen_flags: <defaults>
</compile_context>

<pallas_src>
import functools

import jax
import jax.numpy as jnp
from jax import lax
from jax.experimental import pallas as pl
from jax.experimental.pallas import tpu as pltpu


def _round_up(x, m):
    return ((x + m - 1) // m) * m


def _default_tile():
    # v5 family: 4x(128x128) MXU -> 128-wide tiles; v6e/v7x (256x256 MXU) -> 256.
    try:
        kind = jax.devices()[0].device_kind.lower()
    except Exception:
        return 256
    return 128 if "v5" in kind else 256


def _circle_loss_kernel(xr_ref, xc_ref, labi_ref, labj_ref,   # inputs
                        lsep_ref, lsen_ref,                   # outputs
                        mp, lp, mn, ln,                       # scratch (t,1) f32
                        *, m, gamma, n_valid, t, n_tiles):
    p = pl.program_id(0)          # folded row-pair index   ("parallel")
    q = pl.program_id(1)          # position within the pair ("arbitrary")
    neg_inf = jnp.float32(-jnp.inf)

    # Folded-triangle mapping (p, q) -> live upper-triangle tile (i, j), j >= i.
    # Segment 1: row-tile i1 = p (n_tiles - p live tiles), segment 2: row-tile
    # i2 = n_tiles - 1 - p (p + 1 live tiles) -> every p has equal work.
    n_seg1 = n_tiles - p
    seg2 = q >= n_seg1
    i2 = n_tiles - 1 - p
    i_t = jnp.where(seg2, i2, p)
    j_t = jnp.where(seg2, q - n_seg1 + i2, p + q)

    @pl.when(j_t == i_t)                       # first live tile of this row-tile
    def _init():
        mp[...] = jnp.full_like(mp, -jnp.inf)
        mn[...] = jnp.full_like(mn, -jnp.inf)
        lp[...] = jnp.zeros_like(lp)
        ln[...] = jnp.zeros_like(ln)

    # s[r, c] = <x_row[r], x_col[c]>  (A @ B^T: contract dim 1 of both operands,
    # bf16 in / f32 accumulate, no in-kernel transpose of the column tile).
    s = lax.dot_general(xr_ref[...], xc_ref[...],
                        (((1,), (1,)), ((), ())),
                        preferred_element_type=jnp.float32)   # (t, t) f32
    same = labi_ref[...] == labj_ref[...]                     # (t, t) bool

    def update(m_ref, l_ref, lm):
        # Online logsumexp over masked logits `lm` (-inf at masked entries).
        tile_max = jnp.max(lm, axis=1, keepdims=True)         # (t, 1)
        m_old = m_ref[...]
        m_new = jnp.maximum(m_old, tile_max)
        empty = m_new == neg_inf                              # row still has no entries
        scale = jnp.where(empty, 0.0, jnp.exp(m_old - m_new))
        psum = jnp.sum(jnp.exp(lm - m_new), axis=1, keepdims=True)
        l_ref[...] = jnp.where(empty, 0.0, scale * l_ref[...] + psum)
        m_ref[...] = m_new

    def streams(pos, neg):
        # One stream is fully computed and folded into its accumulator before
        # the next starts -> at most s/same/mask live across streams.
        ap = jnp.maximum((1.0 + m) - s, 0.0)
        update(mp, lp, jnp.where(pos, ap * (s - (1.0 - m)) * (-gamma), neg_inf))
        an = jnp.maximum(s + m, 0.0)
        update(mn, ln, jnp.where(neg, an * (s - m) * gamma, neg_inf))

    interior = jnp.logical_and(i_t < j_t, (j_t + 1) * t <= n_valid)

    @pl.when(interior)
    def _fast():      # strictly above the diagonal, fully un-padded: no masks.
        streams(same, jnp.logical_not(same))

    @pl.when(jnp.logical_not(interior))
    def _edge():      # diagonal and/or padded-edge tile: strict-triu + pad mask.
        grow = i_t * t + lax.broadcasted_iota(jnp.int32, (t, t), 0)
        gcol = j_t * t + lax.broadcasted_iota(jnp.int32, (t, t), 1)
        valid = jnp.logical_and(grow < gcol, gcol < n_valid)  # grow<n implied
        streams(jnp.logical_and(same, valid),
                jnp.logical_and(jnp.logical_not(same), valid))

    @pl.when(j_t == n_tiles - 1)               # last live tile of this row-tile
    def _finalize():
        # Rows with no unmasked entries give -inf + log(0) = -inf; the tiny JAX
        # epilogue (logsumexp + softplus) handles that exactly (loss -> 0).
        lsep_ref[...] = mp[...] + jnp.log(lp[...])
        lsen_ref[...] = mn[...] + jnp.log(ln[...])


def circle_loss(x, labels, *, m=0.25, gamma=2.0, tile=None,
                matmul_dtype=jnp.bfloat16):
    """Circle-loss forward over (N, D) features and (N,) integer labels."""
    n, d = x.shape
    if tile is None:
        tile = _default_tile()
    assert tile % 128 == 0, "tile must be a multiple of 128"

    # Tile edge: multiple of 8; when more than one tile is needed it equals
    # `tile` (multiple of 128 -> lane constraint of the (1, t) label block).
    t = min(tile, _round_up(max(n, 8), 8))
    n_pad = _round_up(n, t)

    # bf16 feeds the MXU at full rate on v5e/v6e/v7x and halves feature DMA;
    # accumulation stays f32 inside the kernel.  matmul_dtype=None -> f32 mode.
    x_pad = x if matmul_dtype is None else x.astype(matmul_dtype)
    if n_pad > n:
        x_pad = jnp.pad(x_pad, ((0, n_pad - n), (0, 0)))
    lab = labels.astype(jnp.int32)
    if n_pad > n:
        lab = jnp.pad(lab, (0, n_pad - n))     # padded rows/cols masked in-kernel
    lab_col = lab.reshape(n_pad, 1)
    lab_row = lab.reshape(1, n_pad)

    n_tiles = n_pad // t
    # Folded-triangle grid: no dead tiles, balanced outer ("parallel") axis.
    grid_p = (n_tiles + 1) // 2
    grid_q = n_tiles + 1 if n_tiles > 1 else n_tiles

    def _fold(p, q):
        n_seg1 = n_tiles - p
        seg2 = q >= n_seg1
        i2 = n_tiles - 1 - p
        i = jnp.where(seg2, i2, p)
        j = jnp.where(seg2, q - n_seg1 + i2, p + q)
        return i, j

    def _row_map(p, q):
        return (_fold(p, q)[0], 0)

    def _col_map(p, q):
        return (_fold(p, q)[1], 0)

    def _labj_map(p, q):
        return (0, _fold(p, q)[1])

    kernel = functools.partial(
        _circle_loss_kernel,
        m=float(m), gamma=float(gamma), n_valid=int(n), t=t, n_tiles=n_tiles)

    grid_spec = pltpu.PrefetchScalarGridSpec(
        num_scalar_prefetch=0,
        grid=(grid_p, grid_q),
        in_specs=[
            pl.BlockSpec((t, d), _row_map),    # row feature tile
            pl.BlockSpec((t, d), _col_map),    # col feature tile (streamed)
            pl.BlockSpec((t, 1), _row_map),    # labels, column shaped
            pl.BlockSpec((1, t), _labj_map),   # labels, row shaped
        ],
        out_specs=[
            pl.BlockSpec((t, 1), _row_map),    # per-row lse partial (positive)
            pl.BlockSpec((t, 1), _row_map),    # per-row lse partial (negative)
        ],
        scratch_shapes=[pltpu.VMEM((t, 1), jnp.float32)] * 4,
    )

    in_itemsize = jnp.dtype(x_pad.dtype).itemsize
    n_steps = grid_p * grid_q                  # == live upper-triangle tiles (+<=1 row redo)
    cost = pl.CostEstimate(
        flops=2 * n_steps * t * t * d,
        transcendentals=2 * n_steps * t * t,
        bytes_accessed=(n_pad * d + n_steps * t * d) * in_itemsize
        + 4 * n_pad * 4 + 4 * n_pad * 4,
    )

    # VMEM budget: double-buffered feature tiles + headroom for (t, t) temporaries.
    vmem_needed = 2 * 2 * t * d * in_itemsize + 16 * t * t * 4 + 64 * t * 4
    vmem_limit = None
    if vmem_needed > 32 * 1024 * 1024:
        vmem_limit = int(min(vmem_needed, 64 * 1024 * 1024))

    lse_p_rows, lse_n_rows = pl.pallas_call(
        kernel,
        out_shape=(jax.ShapeDtypeStruct((n_pad, 1), jnp.float32),
                   jax.ShapeDtypeStruct((n_pad, 1), jnp.float32)),
        grid_spec=grid_spec,
        compiler_params=pltpu.CompilerParams(
            dimension_semantics=("parallel", "arbitrary"),
            vmem_limit_bytes=vmem_limit),
        cost_estimate=cost,
    )(x_pad, x_pad, lab_col, lab_row)

    # Tiny O(N) epilogue: combine per-row partial logsumexps, then softplus.
    lse_p = jax.scipy.special.logsumexp(lse_p_rows)    # -inf rows handled exactly
    lse_n = jax.scipy.special.logsumexp(lse_n_rows)
    return jax.nn.softplus(lse_n + lse_p)


def _reference_circle_loss(x, labels, *, m=0.25, gamma=2.0):
    # Pure-JAX reference mirroring the PyTorch module, for sanity checking.
    s = x @ x.T
    same = labels[:, None] == labels[None, :]
    triu = jnp.triu(jnp.ones_like(same, dtype=bool), k=1)
    pos = same & triu
    neg = (~same) & triu
    ap = jnp.maximum(1.0 + m - s, 0.0)
    an = jnp.maximum(s + m, 0.0)
    logit_p = jnp.where(pos, -ap * (s - (1.0 - m)) * gamma, -jnp.inf)
    logit_n = jnp.where(neg, an * (s - m) * gamma, -jnp.inf)
    z = jax.scipy.special.logsumexp(logit_n) + jax.scipy.special.logsumexp(logit_p)
    return jax.nn.softplus(z)


if __name__ == "__main__":
    key = jax.random.PRNGKey(0)
    k1, k2, k3, k4, k5, k6 = jax.random.split(key, 6)

    def normed(k, n, d):
        f = jax.random.normal(k, (n, d), dtype=jnp.float32)
        return f / jnp.linalg.norm(f, axis=1, keepdims=True)

    # Small case matching the module forward (L2-normalized features, int labels).
    feats = normed(k1, 8, 32)
    labels = jax.random.randint(k2, (8,), 0, 3, dtype=jnp.int32)   # repeats -> positives

    # f32 accuracy mode vs exact-precision reference.
    loss_f32 = jax.block_until_ready(circle_loss(feats, labels, matmul_dtype=None))
    ref_f32 = _reference_circle_loss(feats, labels)
    assert jnp.allclose(loss_f32, ref_f32, rtol=1e-4, atol=1e-4), (loss_f32, ref_f32)

    # Default bf16-MXU mode vs a reference on the same bf16-rounded features
    # (both accumulate in f32, so only ordering differences remain).
    loss_bf16 = jax.block_until_ready(circle_loss(feats, labels))
    ref_bf16 = _reference_circle_loss(
        feats.astype(jnp.bfloat16).astype(jnp.float32), labels)
    assert jnp.allclose(loss_bf16, ref_bf16, rtol=1e-3, atol=1e-3), (loss_bf16, ref_bf16)

    # Multi-tile, odd tile count + padding: exercises the folded grid, interior
    # fast path, diagonal tiles, padded-edge tiles and the middle-row redo.
    feats2 = normed(k3, 300, 64)
    labels2 = jax.random.randint(k4, (300,), 0, 10, dtype=jnp.int32)
    loss2 = jax.block_until_ready(circle_loss(feats2, labels2, tile=128))
    ref2 = _reference_circle_loss(
        feats2.astype(jnp.bfloat16).astype(jnp.float32), labels2)
    assert jnp.allclose(loss2, ref2, rtol=1e-3, atol=1e-3), (loss2, ref2)

    # Multi-tile, even tile count, no padding: two balanced folded row-pairs.
    feats3 = normed(k5, 512, 64)
    labels3 = jax.random.randint(k6, (512,), 0, 20, dtype=jnp.int32)
    loss3 = jax.block_until_ready(circle_loss(feats3, labels3, tile=128))
    ref3 = _reference_circle_loss(
        feats3.astype(jnp.bfloat16).astype(jnp.float32), labels3)
    assert jnp.allclose(loss3, ref3, rtol=1e-3, atol=1e-3), (loss3, ref3)

    # Degenerate: all labels distinct -> no positive pairs -> loss 0, no NaNs.
    labels_d = jnp.arange(8, dtype=jnp.int32)
    loss_d = jax.block_until_ready(circle_loss(feats, labels_d))
    ref_d = _reference_circle_loss(feats, labels_d)
    assert bool(jnp.isfinite(loss_d)) and jnp.allclose(loss_d, ref_d, atol=1e-6), (loss_d, ref_d)

    print("KERNEL_OK")
</pallas_src>

<mosaic_0001>
module attributes {stable_mosaic.version = 11 : i64} {
  func.func @_circle_loss_kernel(%arg0: i32, %arg1: i32, %arg2: memref<8x32xf32, #tpu.memory_space<vmem>>, %arg3: memref<8x32xf32, #tpu.memory_space<vmem>>, %arg4: memref<8x1xi32, #tpu.memory_space<vmem>>, %arg5: memref<1x8xi32, #tpu.memory_space<vmem>>, %arg6: memref<8x1xf32, #tpu.memory_space<vmem>>, %arg7: memref<8x1xf32, #tpu.memory_space<vmem>>, %arg8: memref<8x1xf32, #tpu.memory_space<vmem>>, %arg9: memref<8x1xf32, #tpu.memory_space<vmem>>, %arg10: memref<8x1xf32, #tpu.memory_space<vmem>>, %arg11: memref<8x1xf32, #tpu.memory_space<vmem>>) attributes {dimension_semantics = [#tpu.dimension_semantics<parallel>, #tpu.dimension_semantics<arbitrary>], iteration_bounds = array<i64: 1, 1>, scalar_prefetch = 0 : i64, scratch_operands = 4 : i64, tpu.core_type = #tpu.core_type<tc>, window_params = [{transform_indices = @transform_0, window_bounds = array<i64: 8, 32>}, {transform_indices = @transform_1, window_bounds = array<i64: 8, 32>}, {transform_indices = @transform_2, window_bounds = array<i64: 8, 1>}, {transform_indices = @transform_3, window_bounds = array<i64: 1, 8>}, {transform_indices = @transform_4, window_bounds = array<i64: 8, 1>}, {transform_indices = @transform_5, window_bounds = array<i64: 8, 1>}]} {
    %c1_i32 = arith.constant 1 : i32
    %0 = arith.subi %c1_i32, %arg0 : i32
    %1 = arith.cmpi sge, %arg1, %0 : i32
    %c0_i32 = arith.constant 0 : i32
    %2 = arith.subi %c0_i32, %arg0 : i32
    %3 = arith.select %1, %2, %arg0 : i32
    %4 = arith.subi %arg1, %0 : i32
    %5 = arith.addi %4, %2 : i32
    %6 = arith.addi %arg0, %arg1 : i32
    %7 = arith.select %1, %5, %6 : i32
    %8 = arith.cmpi eq, %7, %3 : i32
    %9 = arith.extui %8 : i1 to i32
    %c0_i32_0 = arith.constant 0 : i32
    %10 = arith.cmpi ne, %9, %c0_i32_0 : i32
    scf.if %10 {
      %cst_16 = arith.constant 0xFF800000 : f32
      %32 = vector.broadcast %cst_16 : f32 to vector<8x1xf32>
      %c0_17 = arith.constant 0 : index
      %c0_18 = arith.constant 0 : index
      %33 = vector.load %arg8[%c0_17, %c0_18] : memref<8x1xf32, #tpu.memory_space<vmem>>, vector<8x1xf32>
      tpu.vector_store %arg8[%c0_17, %c0_18], %32 {strides = array<i32>} : memref<8x1xf32, #tpu.memory_space<vmem>>, vector<8x1xf32>,
      %cst_19 = arith.constant 0xFF800000 : f32
      %34 = vector.broadcast %cst_19 : f32 to vector<8x1xf32>
      %c0_20 = arith.constant 0 : index
      %c0_21 = arith.constant 0 : index
      %35 = vector.load %arg10[%c0_20, %c0_21] : memref<8x1xf32, #tpu.memory_space<vmem>>, vector<8x1xf32>
      tpu.vector_store %arg10[%c0_20, %c0_21], %34 {strides = array<i32>} : memref<8x1xf32, #tpu.memory_space<vmem>>, vector<8x1xf32>,
      %cst_22 = arith.constant 0.000000e+00 : f32
      %36 = vector.broadcast %cst_22 : f32 to vector<8x1xf32>
      %c0_23 = arith.constant 0 : index
      %c0_24 = arith.constant 0 : index
      %37 = vector.load %arg9[%c0_23, %c0_24] : memref<8x1xf32, #tpu.memory_space<vmem>>, vector<8x1xf32>
      tpu.vector_store %arg9[%c0_23, %c0_24], %36 {strides = array<i32>} : memref<8x1xf32, #tpu.memory_space<vmem>>, vector<8x1xf32>,
      %cst_25 = arith.constant 0.000000e+00 : f32
      %38 = vector.broadcast %cst_25 : f32 to vector<8x1xf32>
      %c0_26 = arith.constant 0 : index
      %c0_27 = arith.constant 0 : index
      %39 = vector.load %arg11[%c0_26, %c0_27] : memref<8x1xf32, #tpu.memory_space<vmem>>, vector<8x1xf32>
      tpu.vector_store %arg11[%c0_26, %c0_27], %38 {strides = array<i32>} : memref<8x1xf32, #tpu.memory_space<vmem>>, vector<8x1xf32>,
    } else {
    }
    %c0 = arith.constant 0 : index
    %c0_1 = arith.constant 0 : index
    %11 = vector.load %arg2[%c0, %c0_1] : memref<8x32xf32, #tpu.memory_space<vmem>>, vector<8x32xf32>
    %c0_2 = arith.constant 0 : index
    %c0_3 = arith.constant 0 : index
    %12 = vector.load %arg3[%c0_2, %c0_3] : memref<8x32xf32, #tpu.memory_space<vmem>>, vector<8x32xf32>
    %cst = arith.constant dense<0.000000e+00> : vector<8x8xf32>
    %13 = tpu.matmul %11, %12, %cst {dimension_numbers = #tpu.dot_dimension_numbers<[1], [1], [0], [0], [0, 0, 1, 0], [], []>} : vector<8x32xf32>, vector<8x32xf32>, vector<8x8xf32> -> vector<8x8xf32>
    %c0_4 = arith.constant 0 : index
    %c0_5 = arith.constant 0 : index
    %14 = vector.load %arg4[%c0_4, %c0_5] : memref<8x1xi32, #tpu.memory_space<vmem>>, vector<8x1xi32>
    %c0_6 = arith.constant 0 : index
    %c0_7 = arith.constant 0 : index
    %15 = vector.load %arg5[%c0_6, %c0_7] : memref<1x8xi32, #tpu.memory_space<vmem>>, vector<1x8xi32>
    %16 = vector.broadcast %14 : vector<8x1xi32> to vector<8x8xi32>
    %17 = vector.broadcast %15 : vector<1x8xi32> to vector<8x8xi32>
    %18 = arith.cmpi eq, %16, %17 : vector<8x8xi32>
    %19 = arith.cmpi slt, %3, %7 : i32
    %c1_i32_8 = arith.constant 1 : i32
    %20 = arith.addi %7, %c1_i32_8 : i32
    %c8_i32 = arith.constant 8 : i32
    %21 = arith.muli %20, %c8_i32 : i32
    %c8_i32_9 = arith.constant 8 : i32
    %22 = arith.cmpi sle, %21, %c8_i32_9 : i32
    %23 = arith.andi %19, %22 : i1
    %24 = arith.extui %23 : i1 to i32
    %cst_10 = arith.constant 0xFF800000 : f32
    %c0_i32_11 = arith.constant 0 : i32
    %25 = arith.cmpi ne, %24, %c0_i32_11 : i32
    scf.if %25 {
      %cst_16 = arith.constant dense<true> : vector<8x8xi1>
      %32 = arith.xori %18, %cst_16 : vector<8x8xi1>
      %cst_17 = arith.constant 1.250000e+00 : f32
      %33 = vector.broadcast %cst_17 : f32 to vector<8x8xf32>
      %34 = arith.subf %33, %13 : vector<8x8xf32>
      %cst_18 = arith.constant 0.000000e+00 : f32
      %35 = vector.broadcast %cst_18 : f32 to vector<8x8xf32>
      %36 = arith.maximumf %34, %35 : vector<8x8xf32>
      %cst_19 = arith.constant 7.500000e-01 : f32
      %37 = vector.broadcast %cst_19 : f32 to vector<8x8xf32>
      %38 = arith.subf %13, %37 : vector<8x8xf32>
      %39 = arith.mulf %36, %38 : vector<8x8xf32>
      %cst_20 = arith.constant -2.000000e+00 : f32
      %40 = vector.broadcast %cst_20 : f32 to vector<8x8xf32>
      %41 = arith.mulf %39, %40 : vector<8x8xf32>
      %42 = vector.broadcast %cst_10 : f32 to vector<8x8xf32>
      %43 = arith.select %18, %41, %42 : vector<8x8xi1>, vector<8x8xf32>
      %cst_21 = arith.constant dense<0xFF800000> : vector<8xf32>
      %44 = vector.multi_reduction <maximumf>, %43, %cst_21 [1] : vector<8x8xf32> to vector<8xf32>
      %45 = vector.shape_cast %44 : vector<8xf32> to vector<8x1xf32>
      %c0_22 = arith.constant 0 : index
      %c0_23 = arith.constant 0 : index
      %46 = vector.load %arg8[%c0_22, %c0_23] : memref<8x1xf32, #tpu.memory_space<vmem>>, vector<8x1xf32>
      %47 = arith.maximumf %46, %45 : vector<8x1xf32>
      %48 = vector.broadcast %cst_10 : f32 to vector<8x1xf32>
      %49 = arith.cmpf oeq, %47, %48 : vector<8x1xf32>
      %50 = arith.subf %46, %47 : vector<8x1xf32>
      %51 = math.exp %50 : vector<8x1xf32>
      %cst_24 = arith.constant 0.000000e+00 : f32
      %52 = vector.broadcast %cst_24 : f32 to vector<8x1xf32>
      %53 = arith.select %49, %52, %51 : vector<8x1xi1>, vector<8x1xf32>
      %54 = vector.broadcast %47 : vector<8x1xf32> to vector<8x8xf32>
      %55 = arith.subf %43, %54 : vector<8x8xf32>
      %56 = math.exp %55 : vector<8x8xf32>
      %cst_25 = arith.constant dense<0.000000e+00> : vector<8xf32>
      %57 = vector.multi_reduction <add>, %56, %cst_25 [1] : vector<8x8xf32> to vector<8xf32>
      %58 = vector.shape_cast %57 : vector<8xf32> to vector<8x1xf32>
      %c0_26 = arith.constant 0 : index
      %c0_27 = arith.constant 0 : index
      %59 = vector.load %arg9[%c0_26, %c0_27] : memref<8x1xf32, #tpu.memory_space<vmem>>, vector<8x1xf32>
      %60 = arith.mulf %53, %59 : vector<8x1xf32>
      %61 = arith.addf %60, %58 : vector<8x1xf32>
      %cst_28 = arith.constant 0.000000e+00 : f32
      %62 = vector.broadcast %cst_28 : f32 to vector<8x1xf32>
      %63 = arith.select %49, %62, %61 : vector<8x1xi1>, vector<8x1xf32>
      %c0_29 = arith.constant 0 : index
      %c0_30 = arith.constant 0 : index
      %64 = vector.load %arg9[%c0_29, %c0_30] : memref<8x1xf32, #tpu.memory_space<vmem>>, vector<8x1xf32>
      tpu.vector_store %arg9[%c0_29, %c0_30], %63 {strides = array<i32>} : memref<8x1xf32, #tpu.memory_space<vmem>>, vector<8x1xf32>,
      %c0_31 = arith.constant 0 : index
      %c0_32 = arith.constant 0 : index
      %65 = vector.load %arg8[%c0_31, %c0_32] : memref<8x1xf32, #tpu.memory_space<vmem>>, vector<8x1xf32>
      tpu.vector_store %arg8[%c0_31, %c0_32], %47 {strides = array<i32>} : memref<8x1xf32, #tpu.memory_space<vmem>>, vector<8x1xf32>,
      %cst_33 = arith.constant 2.500000e-01 : f32
      %66 = vector.broadcast %cst_33 : f32 to vector<8x8xf32>
      %67 = arith.addf %13, %66 : vector<8x8xf32>
      %cst_34 = arith.constant 0.000000e+00 : f32
      %68 = vector.broadcast %cst_34 : f32 to vector<8x8xf32>
      %69 = arith.maximumf %67, %68 : vector<8x8xf32>
      %cst_35 = arith.constant 2.500000e-01 : f32
      %70 = vector.broadcast %cst_35 : f32 to vector<8x8xf32>
      %71 = arith.subf %13, %70 : vector<8x8xf32>
      %72 = arith.mulf %69, %71 : vector<8x8xf32>
      %cst_36 = arith.constant 2.000000e+00 : f32
      %73 = vector.broadcast %cst_36 : f32 to vector<8x8xf32>
      %74 = arith.mulf %72, %73 : vector<8x8xf32>
      %75 = vector.broadcast %cst_10 : f32 to vector<8x8xf32>
      %76 = arith.select %32, %74, %75 : vector<8x8xi1>, vector<8x8xf32>
      %cst_37 = arith.constant dense<0xFF800000> : vector<8xf32>
      %77 = vector.multi_reduction <maximumf>, %76, %cst_37 [1] : vector<8x8xf32> to vector<8xf32>
      %78 = vector.shape_cast %77 : vector<8xf32> to vector<8x1xf32>
      %c0_38 = arith.constant 0 : index
      %c0_39 = arith.constant 0 : index
      %79 = vector.load %arg10[%c0_38, %c0_39] : memref<8x1xf32, #tpu.memory_space<vmem>>, vector<8x1xf32>
      %80 = arith.maximumf %79, %78 : vector<8x1xf32>
      %81 = vector.broadcast %cst_10 : f32 to vector<8x1xf32>
      %82 = arith.cmpf oeq, %80, %81 : vector<8x1xf32>
      %83 = arith.subf %79, %80 : vector<8x1xf32>
      %84 = math.exp %83 : vector<8x1xf32>
      %cst_40 = arith.constant 0.000000e+00 : f32
      %85 = vector.broadcast %cst_40 : f32 to vector<8x1xf32>
      %86 = arith.select %82, %85, %84 : vector<8x1xi1>, vector<8x1xf32>
      %87 = vector.broadcast %80 : vector<8x1xf32> to vector<8x8xf32>
      %88 = arith.subf %76, %87 : vector<8x8xf32>
      %89 = math.exp %88 : vector<8x8xf32>
      %cst_41 = arith.constant dense<0.000000e+00> : vector<8xf32>
      %90 = vector.multi_reduction <add>, %89, %cst_41 [1] : vector<8x8xf32> to vector<8xf32>
      %91 = vector.shape_cast %90 : vector<8xf32> to vector<8x1xf32>
      %c0_42 = arith.constant 0 : index
      %c0_43 = arith.constant 0 : index
      %92 = vector.load %arg11[%c0_42, %c0_43] : memref<8x1xf32, #tpu.memory_space<vmem>>, vector<8x1xf32>
      %93 = arith.mulf %86, %92 : vector<8x1xf32>
      %94 = arith.addf %93, %91 : vector<8x1xf32>
      %cst_44 = arith.constant 0.000000e+00 : f32
      %95 = vector.broadcast %cst_44 : f32 to vector<8x1xf32>
      %96 = arith.select %82, %95, %94 : vector<8x1xi1>, vector<8x1xf32>
      %c0_45 = arith.constant 0 : index
      %c0_46 = arith.constant 0 : index
      %97 = vector.load %arg11[%c0_45, %c0_46] : memref<8x1xf32, #tpu.memory_space<vmem>>, vector<8x1xf32>
      tpu.vector_store %arg11[%c0_45, %c0_46], %96 {strides = array<i32>} : memref<8x1xf32, #tpu.memory_space<vmem>>, vector<8x1xf32>,
      %c0_47 = arith.constant 0 : index
      %c0_48 = arith.constant 0 : index
      %98 = vector.load %arg10[%c0_47, %c0_48] : memref<8x1xf32, #tpu.memory_space<vmem>>, vector<8x1xf32>
      tpu.vector_store %arg10[%c0_47, %c0_48], %80 {strides = array<i32>} : memref<8x1xf32, #tpu.memory_space<vmem>>, vector<8x1xf32>,
    } else {
    }
    %true = arith.constant true
    %26 = arith.xori %23, %true : i1
    %27 = arith.extui %26 : i1 to i32
    %cst_12 = arith.constant 0xFF800000 : f32
    %c0_i32_13 = arith.constant 0 : i32
    %28 = arith.cmpi ne, %27, %c0_i32_13 : i32
    scf.if %28 {
      %c8_i32_16 = arith.constant 8 : i32
      %32 = arith.muli %3, %c8_i32_16 : i32
      %33 = tpu.iota {dimensions = array<i32: 0>} : vector<8x8xi32>
      %34 = vector.broadcast %32 : i32 to vector<8x8xi32>
      %35 = arith.addi %34, %33 : vector<8x8xi32>
      %c8_i32_17 = arith.constant 8 : i32
      %36 = arith.muli %7, %c8_i32_17 : i32
      %37 = tpu.iota {dimensions = array<i32: 1>} : vector<8x8xi32>
      %38 = vector.broadcast %36 : i32 to vector<8x8xi32>
      %39 = arith.addi %38, %37 : vector<8x8xi32>
      %40 = arith.cmpi slt, %35, %39 : vector<8x8xi32>
      %c8_i32_18 = arith.constant 8 : i32
      %41 = vector.broadcast %c8_i32_18 : i32 to vector<8x8xi32>
      %42 = arith.cmpi slt, %39, %41 : vector<8x8xi32>
      %43 = arith.andi %40, %42 : vector<8x8xi1>
      %44 = arith.andi %18, %43 : vector<8x8xi1>
      %cst_19 = arith.constant dense<true> : vector<8x8xi1>
      %45 = arith.xori %18, %cst_19 : vector<8x8xi1>
      %46 = arith.andi %45, %43 : vector<8x8xi1>
      %cst_20 = arith.constant 1.250000e+00 : f32
      %47 = vector.broadcast %cst_20 : f32 to vector<8x8xf32>
      %48 = arith.subf %47, %13 : vector<8x8xf32>
      %cst_21 = arith.constant 0.000000e+00 : f32
      %49 = vector.broadcast %cst_21 : f32 to vector<8x8xf32>
      %50 = arith.maximumf %48, %49 : vector<8x8xf32>
      %cst_22 = arith.constant 7.500000e-01 : f32
      %51 = vector.broadcast %cst_22 : f32 to vector<8x8xf32>
      %52 = arith.subf %13, %51 : vector<8x8xf32>
      %53 = arith.mulf %50, %52 : vector<8x8xf32>
      %cst_23 = arith.constant -2.000000e+00 : f32
      %54 = vector.broadcast %cst_23 : f32 to vector<8x8xf32>
      %55 = arith.mulf %53, %54 : vector<8x8xf32>
      %56 = vector.broadcast %cst_12 : f32 to vector<8x8xf32>
      %57 = arith.select %44, %55, %56 : vector<8x8xi1>, vector<8x8xf32>
      %cst_24 = arith.constant dense<0xFF800000> : vector<8xf32>
      %58 = vector.multi_reduction <maximumf>, %57, %cst_24 [1] : vector<8x8xf32> to vector<8xf32>
      %59 = vector.shape_cast %58 : vector<8xf32> to vector<8x1xf32>
      %c0_25 = arith.constant 0 : index
      %c0_26 = arith.constant 0 : index
      %60 = vector.load %arg8[%c0_25, %c0_26] : memref<8x1xf32, #tpu.memory_space<vmem>>, vector<8x1xf32>
      %61 = arith.maximumf %60, %59 : vector<8x1xf32>
      %62 = vector.broadcast %cst_12 : f32 to vector<8x1xf32>
      %63 = arith.cmpf oeq, %61, %62 : vector<8x1xf32>
      %64 = arith.subf %60, %61 : vector<8x1xf32>
      %65 = math.exp %64 : vector<8x1xf32>
      %cst_27 = arith.constant 0.000000e+00 : f32
      %66 = vector.broadcast %cst_27 : f32 to vector<8x1xf32>
      %67 = arith.select %63, %66, %65 : vector<8x1xi1>, vector<8x1xf32>
      %68 = vector.broadcast %61 : vector<8x1xf32> to vector<8x8xf32>
      %69 = arith.subf %57, %68 : vector<8x8xf32>
      %70 = math.exp %69 : vector<8x8xf32>
      %cst_28 = arith.constant dense<0.000000e+00> : vector<8xf32>
      %71 = vector.multi_reduction <add>, %70, %cst_28 [1] : vector<8x8xf32> to vector<8xf32>
      %72 = vector.shape_cast %71 : vector<8xf32> to vector<8x1xf32>
      %c0_29 = arith.constant 0 : index
      %c0_30 = arith.constant 0 : index
      %73 = vector.load %arg9[%c0_29, %c0_30] : memref<8x1xf32, #tpu.memory_space<vmem>>, vector<8x1xf32>
      %74 = arith.mulf %67, %73 : vector<8x1xf32>
      %75 = arith.addf %74, %72 : vector<8x1xf32>
      %cst_31 = arith.constant 0.000000e+00 : f32
      %76 = vector.broadcast %cst_31 : f32 to vector<8x1xf32>
      %77 = arith.select %63, %76, %75 : vector<8x1xi1>, vector<8x1xf32>
      %c0_32 = arith.constant 0 : index
      %c0_33 = arith.constant 0 : index
      %78 = vector.load %arg9[%c0_32, %c0_33] : memref<8x1xf32, #tpu.memory_space<vmem>>, vector<8x1xf32>
      tpu.vector_store %arg9[%c0_32, %c0_33], %77 {strides = array<i32>} : memref<8x1xf32, #tpu.memory_space<vmem>>, vector<8x1xf32>,
      %c0_34 = arith.constant 0 : index
      %c0_35 = arith.constant 0 : index
      %79 = vector.load %arg8[%c0_34, %c0_35] : memref<8x1xf32, #tpu.memory_space<vmem>>, vector<8x1xf32>
      tpu.vector_store %arg8[%c0_34, %c0_35], %61 {strides = array<i32>} : memref<8x1xf32, #tpu.memory_space<vmem>>, vector<8x1xf32>,
      %cst_36 = arith.constant 2.500000e-01 : f32
      %80 = vector.broadcast %cst_36 : f32 to vector<8x8xf32>
      %81 = arith.addf %13, %80 : vector<8x8xf32>
      %cst_37 = arith.constant 0.000000e+00 : f32
      %82 = vector.broadcast %cst_37 : f32 to vector<8x8xf32>
      %83 = arith.maximumf %81, %82 : vector<8x8xf32>
      %cst_38 = arith.constant 2.500000e-01 : f32
      %84 = vector.broadcast %cst_38 : f32 to vector<8x8xf32>
      %85 = arith.subf %13, %84 : vector<8x8xf32>
      %86 = arith.mulf %83, %85 : vector<8x8xf32>
      %cst_39 = arith.constant 2.000000e+00 : f32
      %87 = vector.broadcast %cst_39 : f32 to vector<8x8xf32>
      %88 = arith.mulf %86, %87 : vector<8x8xf32>
      %89 = vector.broadcast %cst_12 : f32 to vector<8x8xf32>
      %90 = arith.select %46, %88, %89 : vector<8x8xi1>, vector<8x8xf32>
      %cst_40 = arith.constant dense<0xFF800000> : vector<8xf32>
      %91 = vector.multi_reduction <maximumf>, %90, %cst_40 [1] : vector<8x8xf32> to vector<8xf32>
      %92 = vector.shape_cast %91 : vector<8xf32> to vector<8x1xf32>
      %c0_41 = arith.constant 0 : index
      %c0_42 = arith.constant 0 : index
      %93 = vector.load %arg10[%c0_41, %c0_42] : memref<8x1xf32, #tpu.memory_space<vmem>>, vector<8x1xf32>
      %94 = arith.maximumf %93, %92 : vector<8x1xf32>
      %95 = vector.broadcast %cst_12 : f32 to vector<8x1xf32>
      %96 = arith.cmpf oeq, %94, %95 : vector<8x1xf32>
      %97 = arith.subf %93, %94 : vector<8x1xf32>
      %98 = math.exp %97 : vector<8x1xf32>
      %cst_43 = arith.constant 0.000000e+00 : f32
      %99 = vector.broadcast %cst_43 : f32 to vector<8x1xf32>
      %100 = arith.select %96, %99, %98 : vector<8x1xi1>, vector<8x1xf32>
      %101 = vector.broadcast %94 : vector<8x1xf32> to vector<8x8xf32>
      %102 = arith.subf %90, %101 : vector<8x8xf32>
      %103 = math.exp %102 : vector<8x8xf32>
      %cst_44 = arith.constant dense<0.000000e+00> : vector<8xf32>
      %104 = vector.multi_reduction <add>, %103, %cst_44 [1] : vector<8x8xf32> to vector<8xf32>
      %105 = vector.shape_cast %104 : vector<8xf32> to vector<8x1xf32>
      %c0_45 = arith.constant 0 : index
      %c0_46 = arith.constant 0 : index
      %106 = vector.load %arg11[%c0_45, %c0_46] : memref<8x1xf32, #tpu.memory_space<vmem>>, vector<8x1xf32>
      %107 = arith.mulf %100, %106 : vector<8x1xf32>
      %108 = arith.addf %107, %105 : vector<8x1xf32>
      %cst_47 = arith.constant 0.000000e+00 : f32
      %109 = vector.broadcast %cst_47 : f32 to vector<8x1xf32>
      %110 = arith.select %96, %109, %108 : vector<8x1xi1>, vector<8x1xf32>
      %c0_48 = arith.constant 0 : index
      %c0_49 = arith.constant 0 : index
      %111 = vector.load %arg11[%c0_48, %c0_49] : memref<8x1xf32, #tpu.memory_space<vmem>>, vector<8x1xf32>
      tpu.vector_store %arg11[%c0_48, %c0_49], %110 {strides = array<i32>} : memref<8x1xf32, #tpu.memory_space<vmem>>, vector<8x1xf32>,
      %c0_50 = arith.constant 0 : index
      %c0_51 = arith.constant 0 : index
      %112 = vector.load %arg10[%c0_50, %c0_51] : memref<8x1xf32, #tpu.memory_space<vmem>>, vector<8x1xf32>
      tpu.vector_store %arg10[%c0_50, %c0_51], %94 {strides = array<i32>} : memref<8x1xf32, #tpu.memory_space<vmem>>, vector<8x1xf32>,
    } else {
    }
    %c0_i32_14 = arith.constant 0 : i32
    %29 = arith.cmpi eq, %7, %c0_i32_14 : i32
    %30 = arith.extui %29 : i1 to i32
    %c0_i32_15 = arith.constant 0 : i32
    %31 = arith.cmpi ne, %30, %c0_i32_15 : i32
    scf.if %31 {
      %c0_16 = arith.constant 0 : index
      %c0_17 = arith.constant 0 : index
      %32 = vector.load %arg8[%c0_16, %c0_17] : memref<8x1xf32, #tpu.memory_space<vmem>>, vector<8x1xf32>
      %c0_18 = arith.constant 0 : index
      %c0_19 = arith.constant 0 : index
      %33 = vector.load %arg9[%c0_18, %c0_19] : memref<8x1xf32, #tpu.memory_space<vmem>>, vector<8x1xf32>
      %34 = math.log %33 : vector<8x1xf32>
      %35 = arith.addf %32, %34 : vector<8x1xf32>
      %c0_20 = arith.constant 0 : index
      %c0_21 = arith.constant 0 : index
      %36 = vector.load %arg6[%c0_20, %c0_21] : memref<8x1xf32, #tpu.memory_space<vmem>>, vector<8x1xf32>
      tpu.vector_store %arg6[%c0_20, %c0_21], %35 {strides = array<i32>} : memref<8x1xf32, #tpu.memory_space<vmem>>, vector<8x1xf32>,
      %c0_22 = arith.constant 0 : index
      %c0_23 = arith.constant 0 : index
      %37 = vector.load %arg10[%c0_22, %c0_23] : memref<8x1xf32, #tpu.memory_space<vmem>>, vector<8x1xf32>
      %c0_24 = arith.constant 0 : index
      %c0_25 = arith.constant 0 : index
      %38 = vector.load %arg11[%c0_24, %c0_25] : memref<8x1xf32, #tpu.memory_space<vmem>>, vector<8x1xf32>
      %39 = math.log %38 : vector<8x1xf32>
      %40 = arith.addf %37, %39 : vector<8x1xf32>
      %c0_26 = arith.constant 0 : index
      %c0_27 = arith.constant 0 : index
      %41 = vector.load %arg7[%c0_26, %c0_27] : memref<8x1xf32, #tpu.memory_space<vmem>>, vector<8x1xf32>
      tpu.vector_store %arg7[%c0_26, %c0_27], %40 {strides = array<i32>} : memref<8x1xf32, #tpu.memory_space<vmem>>, vector<8x1xf32>,
    } else {
    }
    return
  }
  func.func @transform_0(%arg0: i32, %arg1: i32) -> (i32, i32) {
    %c1_i32 = arith.constant 1 : i32
    %0 = arith.subi %c1_i32, %arg0 : i32
    %1 = arith.cmpi sge, %arg1, %0 : i32
    %c0_i32 = arith.constant 0 : i32
    %2 = arith.subi %c0_i32, %arg0 : i32
    %3 = arith.select %1, %2, %arg0 : i32
    %4 = arith.subi %arg1, %0 : i32
    %5 = arith.addi %4, %2 : i32
    %6 = arith.addi %arg0, %arg1 : i32
    %7 = arith.select %1, %5, %6 : i32
    %c0_i32_0 = arith.constant 0 : i32
    %c0_i32_1 = arith.constant 0 : i32
    return %3, %c0_i32_0 : i32, i32
  }
  func.func @transform_1(%arg0: i32, %arg1: i32) -> (i32, i32) {
    %c1_i32 = arith.constant 1 : i32
    %0 = arith.subi %c1_i32, %arg0 : i32
    %1 = arith.cmpi sge, %arg1, %0 : i32
    %c0_i32 = arith.constant 0 : i32
    %2 = arith.subi %c0_i32, %arg0 : i32
    %3 = arith.select %1, %2, %arg0 : i32
    %4 = arith.subi %arg1, %0 : i32
    %5 = arith.addi %4, %2 : i32
    %6 = arith.addi %arg0, %arg1 : i32
    %7 = arith.select %1, %5, %6 : i32
    %c0_i32_0 = arith.constant 0 : i32
    %c0_i32_1 = arith.constant 0 : i32
    return %7, %c0_i32_0 : i32, i32
  }
  func.func @transform_2(%arg0: i32, %arg1: i32) -> (i32, i32) {
    %c1_i32 = arith.constant 1 : i32
    %0 = arith.subi %c1_i32, %arg0 : i32
    %1 = arith.cmpi sge, %arg1, %0 : i32
    %c0_i32 = arith.constant 0 : i32
    %2 = arith.subi %c0_i32, %arg0 : i32
    %3 = arith.select %1, %2, %arg0 : i32
    %4 = arith.subi %arg1, %0 : i32
    %5 = arith.addi %4, %2 : i32
    %6 = arith.addi %arg0, %arg1 : i32
    %7 = arith.select %1, %5, %6 : i32
    %c0_i32_0 = arith.constant 0 : i32
    %c0_i32_1 = arith.constant 0 : i32
    return %3, %c0_i32_0 : i32, i32
  }
  func.func @transform_3(%arg0: i32, %arg1: i32) -> (i32, i32) {
    %c1_i32 = arith.constant 1 : i32
    %0 = arith.subi %c1_i32, %arg0 : i32
    %1 = arith.cmpi sge, %arg1, %0 : i32
    %c0_i32 = arith.constant 0 : i32
    %2 = arith.subi %c0_i32, %arg0 : i32
    %3 = arith.select %1, %2, %arg0 : i32
    %4 = arith.subi %arg1, %0 : i32
    %5 = arith.addi %4, %2 : i32
    %6 = arith.addi %arg0, %arg1 : i32
    %7 = arith.select %1, %5, %6 : i32
    %c0_i32_0 = arith.constant 0 : i32
    %c0_i32_1 = arith.constant 0 : i32
    return %c0_i32_0, %7 : i32, i32
  }
  func.func @transform_4(%arg0: i32, %arg1: i32) -> (i32, i32) {
    %c1_i32 = arith.constant 1 : i32
    %0 = arith.subi %c1_i32, %arg0 : i32
    %1 = arith.cmpi sge, %arg1, %0 : i32
    %c0_i32 = arith.constant 0 : i32
    %2 = arith.subi %c0_i32, %arg0 : i32
    %3 = arith.select %1, %2, %arg0 : i32
    %4 = arith.subi %arg1, %0 : i32
    %5 = arith.addi %4, %2 : i32
    %6 = arith.addi %arg0, %arg1 : i32
    %7 = arith.select %1, %5, %6 : i32
    %c0_i32_0 = arith.constant 0 : i32
    %c0_i32_1 = arith.constant 0 : i32
    return %3, %c0_i32_0 : i32, i32
  }
  func.func @transform_5(%arg0: i32, %arg1: i32) -> (i32, i32) {
    %c1_i32 = arith.constant 1 : i32
    %0 = arith.subi %c1_i32, %arg0 : i32
    %1 = arith.cmpi sge, %arg1, %0 : i32
    %c0_i32 = arith.constant 0 : i32
    %2 = arith.subi %c0_i32, %arg0 : i32
    %3 = arith.select %1, %2, %arg0 : i32
    %4 = arith.subi %arg1, %0 : i32
    %5 = arith.addi %4, %2 : i32
    %6 = arith.addi %arg0, %arg1 : i32
    %7 = arith.select %1, %5, %6 : i32
    %c0_i32_0 = arith.constant 0 : i32
    %c0_i32_1 = arith.constant 0 : i32
    return %3, %c0_i32_0 : i32, i32
  }
}

</mosaic_0001>

<llo_original>
// kernel: tpu_custom_call.1
$region0: #{tpu_custom_call.1}
  #allocation0 [shape = 'u32[]', space=smem, size = 0x4, offset = 0x4, fixed_abs, tag = 'smem constant byte address 0x4 - core index']
  #allocation1 [shape = 'u32[144,128]{1,0:T(1,128)}', space=vmem, size = 0x12000, scoped, tag = 'internal scratch']
  #allocation2 [shape = 'f32[8,1]{1,0:T(8,128)}', space=vmem, size = 0x1000, scoped, tag = 'scratch operand']
  #allocation3 [shape = 'f32[8,1]{1,0:T(8,128)}', space=vmem, size = 0x1000, scoped, tag = 'scratch operand']
  #allocation4 [shape = 'f32[8,1]{1,0:T(8,128)}', space=vmem, size = 0x1000, scoped, tag = 'scratch operand']
  #allocation5 [shape = 'f32[8,1]{1,0:T(8,128)}', space=vmem, size = 0x1000, scoped, tag = 'scratch operand']
  %s0 = inlined_call_operand.vmem [shape: f32[8,32], index: 0, kind: input, shape index: {}]
  %s1 = inlined_call_operand.hbm [shape: f32[8,32], index: 1, kind: input, shape index: {}]
  %s2 = inlined_call_operand.vmem [shape: s32[8,1], index: 2, kind: input, shape index: {}]
  %s3 = inlined_call_operand.vmem [shape: s32[1,8], index: 3, kind: input, shape index: {}]
  %s4 = inlined_call_operand.vmem [shape: f32[8,1], index: 4, kind: output, shape index: {0}]
  %s5 = inlined_call_operand.vmem [shape: f32[8,1], index: 5, kind: output, shape index: {1}]
  %6 = xla_tuple %s4, %s5
  %s7 = sld [smem:[#allocation0]]
  $region54: #{tpu_custom_call.1} parent=0
    _
  %s9 = ssub.s32 1, %s7
  %s10 = scalar_select 0, %s9, %s7
  $region1: #{tpu_custom_call.1} parent=0
    #allocation6 [shape = 'u8[4096]{0}', space=vmem, size = 0x1000, scoped, tag = 'input window, operand 1, single buffered']
    #allocation7 [shape = 's32[1]{0}', space=sflag, size = 0x4, scoped, tag = 'scoped memory for tpu_custom_call.1']
    %11 = vsyncpa [#allocation7], 0
    // Predicated region
    $region2: #{tpu_custom_call.1} parent=1 // pred_check
      _
    $region3: #{tpu_custom_call.1} parent=1 // pred_check_branch
      %13 = sbr.rel (0) target = $region5
    $region4: #{tpu_custom_call.1} parent=1 // pred_region
      %s14 = ssub.s32 1, 0
      %p15 = scmp.ge.s32.totalorder 0, %s14
      %s16 = ssub.s32 0, 0
      %s17 = scalar_select %p15, %s16, 0
      %p18 = scmp.lt.s32.totalorder %s17, 0
      %s19 = scalar_select %p18, %s17, 0
      %s20 = smul.addr %s19, 8
      %s21 = scalar_lea.vmem %s0, %s20
      %s22 = ssub.s32 1, 0
      %p23 = scmp.ge.s32.totalorder 0, %s22
      %s24 = ssub.s32 0, 0
      %s25 = scalar_select %p23, %s24, 0
    $region5: #{tpu_custom_call.1} parent=1 // pred_fallthru
      _
    // Predicated region
    $region6: #{tpu_custom_call.1} parent=1 // pred_check
      _
    $region7: #{tpu_custom_call.1} parent=1 // pred_check_branch
      %27 = sbr.rel (0) target = $region9
    $region8: #{tpu_custom_call.1} parent=1 // pred_region
      %s28 = ssub.s32 1, 0
      %p29 = scmp.ge.s32.totalorder 0, %s28
      %s30 = ssub.s32 0, 0
      %s31 = ssub.s32 0, %s28
      %s32 = sadd.s32 %s31, %s30
      %s33 = sadd.s32 0, 0
      %s34 = scalar_select %p29, %s32, %s33
      %s36 = ssub.s32 128, 128
      %37 = vsyncadd [#allocation7], %s36
      %s38 = smul.addr %s34, 128
      %s39 = scalar_lea.hbm %s1, %s38
      %s41 = sshll.u32 [#allocation6], 4
      %s42 = int_to_ptr.vmem [resolvable:$true] %s41
      %44 = dma.hbm_to_vmem [thread:$0]  %s39, 128, %s42, [#allocation7]
    $region9: #{tpu_custom_call.1} parent=1 // pred_fallthru
      _
    // Predicated region
    $region10: #{tpu_custom_call.1} parent=1 // pred_check
      _
    $region11: #{tpu_custom_call.1} parent=1 // pred_check_branch
      %46 = sbr.rel (0) target = $region13
    $region12: #{tpu_custom_call.1} parent=1 // pred_region
      %s47 = ssub.s32 1, 0
      %p48 = scmp.ge.s32.totalorder 0, %s47
      %s49 = ssub.s32 0, 0
      %s50 = scalar_select %p48, %s49, 0
      %p51 = scmp.lt.s32.totalorder %s50, 0
      %s52 = scalar_select %p51, %s50, 0
      %s53 = smul.addr %s52, 8
      %s54 = scalar_lea.vmem %s2, %s53
      %s55 = ssub.s32 1, 0
      %p56 = scmp.ge.s32.totalorder 0, %s55
      %s57 = ssub.s32 0, 0
      %s58 = scalar_select %p56, %s57, 0
    $region13: #{tpu_custom_call.1} parent=1 // pred_fallthru
      _
    // Predicated region
    $region14: #{tpu_custom_call.1} parent=1 // pred_check
      _
    $region15: #{tpu_custom_call.1} parent=1 // pred_check_branch
      %60 = sbr.rel (0) target = $region17
    $region16: #{tpu_custom_call.1} parent=1 // pred_region
      %s61 = ssub.s32 1, 0
      %p62 = scmp.ge.s32.totalorder 0, %s61
      %s63 = ssub.s32 0, 0
      %s64 = ssub.s32 0, %s61
      %s65 = sadd.s32 %s64, %s63
      %s66 = sadd.s32 0, 0
      %s67 = scalar_select %p62, %s65, %s66
      %p68 = scmp.lt.s32.totalorder %s67, 0
      %s69 = scalar_select %p68, %s67, 0
      %s70 = scalar_lea.vmem %s3, %s69
      %s71 = ssub.s32 1, 0
      %p72 = scmp.ge.s32.totalorder 0, %s71
      %s73 = ssub.s32 0, 0
      %s74 = ssub.s32 0, %s71
      %s75 = sadd.s32 %s74, %s73
      %s76 = sadd.s32 0, 0
      %s77 = scalar_select %p72, %s75, %s76
    $region17: #{tpu_custom_call.1} parent=1 // pred_fallthru
      _
    // Predicated region
    $region18: #{tpu_custom_call.1} parent=1 // pred_check
      _
    $region19: #{tpu_custom_call.1} parent=1 // pred_check_branch
      %79 = sbr.rel (0) target = $region21
    $region20: #{tpu_custom_call.1} parent=1 // pred_region
      %80 = dma.done [#allocation7], 128
    $region21: #{tpu_custom_call.1} parent=1 // pred_fallthru
      _
    %s81 = ssub.s32 1, 0
    %p82 = scmp.ge.s32.totalorder 0, %s81
    %s83 = ssub.s32 0, 0
    %s84 = scalar_select %p82, %s83, 0
    %p85 = scmp.lt.s32.totalorder %s84, 0
    %s86 = scalar_select %p85, %s84, 0
    %s87 = smul.addr %s86, 8
    %s88 = scalar_lea.vmem %s0, %s87
    %s89 = ssub.s32 1, 0
    %p90 = scmp.ge.s32.totalorder 0, %s89
    %s91 = ssub.s32 0, 0
    %s92 = scalar_select %p90, %s91, 0
    %p93 = scmp.lt.s32.totalorder %s92, 0
    %s94 = scalar_select %p93, %s92, 0
    %s95 = smul.addr %s94, 8
    %s96 = scalar_lea.vmem %s2, %s95
    %s97 = ssub.s32 1, 0
    %p98 = scmp.ge.s32.totalorder 0, %s97
    %s99 = ssub.s32 0, 0
    %s100 = ssub.s32 0, %s97
    %s101 = sadd.s32 %s100, %s99
    %s102 = sadd.s32 0, 0
    %s103 = scalar_select %p98, %s101, %s102
    %p104 = scmp.lt.s32.totalorder %s103, 0
    %s105 = scalar_select %p104, %s103, 0
    %s106 = scalar_lea.vmem %s3, %s105
    %s107 = ssub.s32 1, 0
    %p108 = scmp.ge.s32.totalorder 0, %s107
    %s109 = ssub.s32 0, 0
    %s110 = scalar_select %p108, %s109, 0
    %p111 = scmp.lt.s32.totalorder %s110, 0
    %s112 = scalar_select %p111, %s110, 0
    %s113 = smul.addr %s112, 8
    %s114 = scalar_lea.vmem %s4, %s113
    %s115 = ssub.s32 1, 0
    %p116 = scmp.ge.s32.totalorder 0, %s115
    %s117 = ssub.s32 0, 0
    %s118 = scalar_select %p116, %s117, 0
    %p119 = scmp.lt.s32.totalorder %s118, 0
    %s120 = scalar_select %p119, %s118, 0
    %s121 = smul.addr %s120, 8
    %s122 = scalar_lea.vmem %s5, %s121
    %s123 = ssub.s32 1, 0
    %p124 = scmp.ge.s32.totalorder 0, %s123
    %s125 = ssub.s32 0, 0
    %s126 = scalar_select %p124, %s125, 0
    %p127 = scmp.lt.s32.totalorder %s126, 0
    %s128 = scalar_select %p127, %s126, 0
    %s129 = smul.addr %s128, 8
    %s130 = scalar_lea.vmem %s0, %s129
    %s131 = ssub.s32 1, 0
    %p132 = scmp.ge.s32.totalorder 0, %s131
    %s133 = ssub.s32 0, 0
    %s134 = scalar_select %p132, %s133, 0
    %s135 = ssub.s32 1, 0
    %p136 = scmp.ge.s32.totalorder 0, %s135
    %s137 = ssub.s32 0, 0
    %s138 = ssub.s32 0, %s135
    %s139 = sadd.s32 %s138, %s137
    %s140 = sadd.s32 0, 0
    %s141 = scalar_select %p136, %s139, %s140
    %s142 = ssub.s32 1, 0
    %p143 = scmp.ge.s32.totalorder 0, %s142
    %s144 = ssub.s32 0, 0
    %s145 = scalar_select %p143, %s144, 0
    %p146 = scmp.lt.s32.totalorder %s145, 0
    %s147 = scalar_select %p146, %s145, 0
    %s148 = smul.addr %s147, 8
    %s149 = scalar_lea.vmem %s2, %s148
    %s150 = ssub.s32 1, 0
    %p151 = scmp.ge.s32.totalorder 0, %s150
    %s152 = ssub.s32 0, 0
    %s153 = scalar_select %p151, %s152, 0
    %s154 = ssub.s32 1, 0
    %p155 = scmp.ge.s32.totalorder 0, %s154
    %s156 = ssub.s32 0, 0
    %s157 = ssub.s32 0, %s154
    %s158 = sadd.s32 %s157, %s156
    %s159 = sadd.s32 0, 0
    %s160 = scalar_select %p155, %s158, %s159
    %p161 = scmp.lt.s32.totalorder %s160, 0
    %s162 = scalar_select %p161, %s160, 0
    %s163 = scalar_lea.vmem %s3, %s162
    %s164 = ssub.s32 1, 0
    %p165 = scmp.ge.s32.totalorder 0, %s164
    %s166 = ssub.s32 0, 0
    %s167 = ssub.s32 0, %s164
    %s168 = sadd.s32 %s167, %s166
    %s169 = sadd.s32 0, 0
    %s170 = scalar_select %p165, %s168, %s169
    %s171 = ssub.s32 1, 0
    %p172 = scmp.ge.s32.totalorder 0, %s171
    %s173 = ssub.s32 0, 0
    %s174 = scalar_select %p172, %s173, 0
    %p175 = scmp.lt.s32.totalorder %s174, 0
    %s176 = scalar_select %p175, %s174, 0
    %s177 = smul.addr %s176, 8
    %s178 = scalar_lea.vmem %s4, %s177
    %s179 = ssub.s32 1, 0
    %p180 = scmp.ge.s32.totalorder 0, %s179
    %s181 = ssub.s32 0, 0
    %s182 = scalar_select %p180, %s181, 0
    %s183 = ssub.s32 1, 0
    %p184 = scmp.ge.s32.totalorder 0, %s183
    %s185 = ssub.s32 0, 0
    %s186 = scalar_select %p184, %s185, 0
    %p187 = scmp.lt.s32.totalorder %s186, 0
    %s188 = scalar_select %p187, %s186, 0
    %s189 = smul.addr %s188, 8
    %s190 = scalar_lea.vmem %s5, %s189
    %s191 = ssub.s32 1, 0
    %p192 = scmp.ge.s32.totalorder 0, %s191
    %s193 = ssub.s32 0, 0
    %s194 = scalar_select %p192, %s193, 0
    %s195 = ssub.s32 1, 0
    %p196 = scmp.ge.s32.totalorder 0, %s195
    %s197 = ssub.s32 0, 0
    %s198 = scalar_select %p196, %s197, 0
    %s199 = ssub.s32 0, %s195
    %s200 = sadd.s32 %s199, %s197
    %s201 = sadd.s32 0, 0
    %s202 = scalar_select %p196, %s200, %s201
    %p203 = scmp.eq.s32.totalorder %s202, %s198
    // Predicated region
    $region22: #{tpu_custom_call.1} parent=1 // pred_check
      %p204 = pneg %p203
    $region23: #{tpu_custom_call.1} parent=1 // pred_check_branch
      %206 = sbr.rel (%p204) target = $region25
    $region24: #{tpu_custom_call.1} parent=1 // pred_region
      %vm207 = vcmask 7168
      %208 = vst.msk [vmem:[#allocation2] sm:$0xff] %vm207, -inf
      %209 = vst.msk [vmem:[#allocation4] sm:$0xff] %vm207, -inf
      %210 = vst.msk [vmem:[#allocation3] sm:$0xff] %vm207, 0.0
      %211 = vst.msk [vmem:[#allocation5] sm:$0xff] %vm207, 0.0
    $region25: #{tpu_custom_call.1} parent=1 // pred_fallthru
      _
    %v212 = vld [vmem:[%s130] sm:$0xff]
    %v213 = vld [vmem:[#allocation6] sm:$0xff]
    %vm214 = vcmask 261120
    %v216 = vsel %vm214, %v212, 0
    %v219 = vsel %vm214, %v213, 0
    %221 = vmatprep.subr.mxu0 0.0
    %222 = vmatpush1.xpose.msra.mxu0 %v219
    %223 = vmatprep.subr.mxu0 0.0
    %224 = vmatpush1.xpose.msra.mxu0 0.0
    %225 = vmatprep.subr.mxu0 0.0
    %226 = vmatpush1.xpose.msra.mxu0 0.0
    %227 = vmatprep.subr.mxu0 0.0
    %228 = vmatpush1.xpose.msra.mxu0 0.0
    %229 = vmatprep.subr.mxu0 0.0
    %230 = vmatpush1.xpose.msra.mxu0 0.0
    %231 = vmatprep.subr.mxu0 0.0
    %232 = vmatpush1.xpose.msra.mxu0 0.0
    %233 = vmatprep.subr.mxu0 0.0
    %234 = vmatpush1.xpose.msra.mxu0 0.0
    %235 = vmatprep.subr.mxu0 0.0
    %236 = vmatpush1.xpose.msra.mxu0 0.0
    %237 = vmatprep.subr.mxu0 0.0
    %238 = vmatpush1.xpose.msra.mxu0 0.0
    %239 = vmatprep.subr.mxu0 0.0
    %240 = vmatpush1.xpose.msra.mxu0 0.0
    %241 = vmatprep.subr.mxu0 0.0
    %242 = vmatpush1.xpose.msra.mxu0 0.0
    %243 = vmatprep.subr.mxu0 0.0
    %244 = vmatpush1.xpose.msra.mxu0 0.0
    %245 = vmatprep.subr.mxu0 0.0
    %246 = vmatpush1.xpose.msra.mxu0 0.0
    %247 = vmatprep.subr.mxu0 0.0
    %248 = vmatpush1.xpose.msra.mxu0 0.0
    %249 = vmatprep.subr.mxu0 0.0
    %250 = vmatpush1.xpose.msra.mxu0 0.0
    %251 = vmatprep.subr.mxu0 0.0
    %252 = vmatpush1.xpose.msra.mxu0 0.0
    %253 = vmatprep.subr.mxu0 0.0
    %254 = vmatpush1.xpose.msra.mxu0 0.0
    %255 = vmatprep.subr.mxu0 0.0
    %256 = vmatpush1.xpose.msra.mxu0 0.0
    %257 = vmatprep.subr.mxu0 0.0
    %258 = vmatpush1.xpose.msra.mxu0 0.0
    %259 = vmatprep.subr.mxu0 0.0
    %260 = vmatpush1.xpose.msra.mxu0 0.0
    %261 = vmatprep.subr.mxu0 0.0
    %262 = vmatpush1.xpose.msra.mxu0 0.0
    %263 = vmatprep.subr.mxu0 0.0
    %264 = vmatpush1.xpose.msra.mxu0 0.0
    %265 = vmatprep.subr.mxu0 0.0
    %266 = vmatpush1.xpose.msra.mxu0 0.0
    %267 = vmatprep.subr.mxu0 0.0
    %268 = vmatpush1.xpose.msra.mxu0 0.0
    %269 = vmatprep.subr.mxu0 0.0
    %270 = vmatpush1.xpose.msra.mxu0 0.0
    %271 = vmatprep.subr.mxu0 0.0
    %272 = vmatpush1.xpose.msra.mxu0 0.0
    %273 = vmatprep.subr.mxu0 0.0
    %274 = vmatpush1.xpose.msra.mxu0 0.0
    %275 = vmatprep.subr.mxu0 0.0
    %276 = vmatpush1.xpose.msra.mxu0 0.0
    %277 = vmatprep.subr.mxu0 0.0
    %278 = vmatpush1.xpose.msra.mxu0 0.0
    %279 = vmatprep.subr.mxu0 0.0
    %280 = vmatpush1.xpose.msra.mxu0 0.0
    %281 = vmatprep.subr.mxu0 0.0
    %282 = vmatpush1.xpose.msra.mxu0 0.0
    %283 = vmatprep.subr.mxu0 0.0
    %284 = vmatpush1.xpose.msra.mxu0 0.0
    %285 = vmatprep.mubr.f32.mxu0 0.0
    %286 = vmatmul.mubr.f32.gmra.mrb[0].mxu0 %v216
    %v287 = vpop.f32.mrb[0].mxu0
    %v288 = vadd.f32 0.0, %v287
    %v289 = vpop.f32.mrb[0].mxu0
    %290 = vdwg.mxu0
    %v291 = vld [vmem:[%s149] sm:$0xff]
    %v292 = vld [vmem:[%s163] sm:$0x1]
    %293 = vset.pattern.permute.xlu0 0
    %294 = vperm.xlu0 %293, %v291
    %v295 = vpop.permute.xlu0 %294
    %v296 = vlaneseq
    %v297 = vshrl.u32 %v296, 7
    %v298 = vsub.s32 0, %v297
    %v299 = vrot.slane %v292, %v298
    %vm300 = vcmp.eq.s32.totalorder %v295, %v299
    %p301 = scmp.lt.s32.totalorder %s198, %s202
    %s302 = sadd.s32 %s202, 1
    %s303 = smul.u32 %s302, 8
    %p304 = scmp.le.s32.totalorder %s303, 8
    %p305 = pnand %p301, %p304
    %p306 = pneg %p305
    // Predicated region
    $region26: #{tpu_custom_call.1} parent=1 // pred_check
      _
    $region27: #{tpu_custom_call.1} parent=1 // pred_check_branch
      %308 = sbr.rel (%p305) target = $region29
    $region28: #{tpu_custom_call.1} parent=1 // pred_region
      %vm309 = vmxor %vm300, 1
      %v310 = vsub.f32 1.25, %v288
      %v311 = vmax.f32 %v310, 0.0
      %v312 = vsub.f32 %v288, 0.75
      %v313 = vmul.f32 %v311, %v312
      %v314 = vmul.f32 %v313, -2.0
      %v315 = vsel %vm300, %v314, -inf
      %vm316 = vcmask 64512
      %v317 = vsel %vm316, %v315, -inf
      %318 = vmax.xlane.f32.xlu0 %v317
      %v319 = vpop.xlane.xlu0 %318
      %v320 = vld [vmem:[#allocation2] sm:$0xff]
      %v321 = vmax.f32 %v320, %v319
      %vm322 = vcmp.eq.f32.partialorder %v321, -inf
      %v323 = vsub.f32 %v320, %v321
      %v324 = vmul.f32 %v323, 1.442695
      %v325 = vpow.pop %v324
      %v326 = vsel %vm322, 0.0, %v325
      %328 = vset.pattern.permute.xlu0 0
      %329 = vperm.xlu0 %328, %v321
      %v330 = vpop.permute.xlu0 %329
      %v332 = vsub.f32 %v315, %v330
      %v333 = vmul.f32 %v332, 1.442695
      %v334 = vpow.pop %v333
      %v335 = vsel %vm316, %v334, 0.0
      %336 = vadd.xlane.f32.xlu0 %v335
      %v337 = vpop.xlane.xlu0 %336
      %v338 = vld [vmem:[#allocation3] sm:$0xff]
      %v339 = vmul.f32 %v326, %v338
      %v340 = vadd.f32 %v339, %v337
      %v341 = vsel %vm322, 0.0, %v340
      %vm342 = vcmask 7168
      %343 = vst.msk [vmem:[#allocation3] sm:$0xff] %vm342, %v341
      %344 = vst.msk [vmem:[#allocation2] sm:$0xff] %vm342, %v321
      %v345 = vadd.f32 %v288, 0.25
      %v346 = vmax.f32 %v345, 0.0
      %v347 = vsub.f32 %v288, 0.25
      %v348 = vmul.f32 %v346, %v347
      %v349 = vmul.f32 %v348, 2.0
      %v350 = vsel %vm309, %v349, -inf
      %v351 = vsel %vm316, %v350, -inf
      %352 = vmax.xlane.f32.xlu0 %v351
      %v353 = vpop.xlane.xlu0 %352
      %v354 = vld [vmem:[#allocation4] sm:$0xff]
      %v355 = vmax.f32 %v354, %v353
      %vm356 = vcmp.eq.f32.partialorder %v355, -inf
      %v357 = vsub.f32 %v354, %v355
      %v358 = vmul.f32 %v357, 1.442695
      %v359 = vpow.pop %v358
      %v360 = vsel %vm356, 0.0, %v359
      %362 = vset.pattern.permute.xlu0 0
      %363 = vperm.xlu0 %362, %v355
      %v364 = vpop.permute.xlu0 %363
      %v366 = vsub.f32 %v350, %v364
      %v367 = vmul.f32 %v366, 1.442695
      %v368 = vpow.pop %v367
      %v369 = vsel %vm316, %v368, 0.0
      %370 = vadd.xlane.f32.xlu0 %v369
      %v371 = vpop.xlane.xlu0 %370
      %v372 = vld [vmem:[#allocation5] sm:$0xff]
      %v373 = vmul.f32 %v360, %v372
      %v374 = vadd.f32 %v373, %v371
      %v375 = vsel %vm356, 0.0, %v374
      %376 = vst.msk [vmem:[#allocation5] sm:$0xff] %vm342, %v375
      %377 = vst.msk [vmem:[#allocation4] sm:$0xff] %vm342, %v355
    $region29: #{tpu_custom_call.1} parent=1 // pred_fallthru
      _
    // Predicated region
    $region30: #{tpu_custom_call.1} parent=1 // pred_check
      %p378 = pneg %p305
    $region31: #{tpu_custom_call.1} parent=1 // pred_check_branch
      %380 = sbr.rel (%p378) target = $region33
    $region32: #{tpu_custom_call.1} parent=1 // pred_region
      %s381 = smul.u32 %s198, 8
      %v382 = vlaneseq
      %v383 = vshrl.u32 %v382, 7
      %v384 = vstv %s381
      %v385 = vadd.s32 %v384, %v383
      %s386 = smul.u32 %s202, 8
      %v387 = vlaneseq
      %v388 = vand.u32 %v387, 127
      %v389 = vstv %s386
      %v390 = vadd.s32 %v389, %v388
      %vm391 = vcmp.lt.s32.totalorder %v385, %v390
      %vm392 = vcmp.lt.s32.totalorder %v390, 8
      %vm393 = vmand %vm391, %vm392
      %vm394 = vmand %vm300, %vm393
      %vm395 = vmxor %vm300, 1
      %vm396 = vmand %vm395, %vm393
      %v397 = vsub.f32 1.25, %v288
      %v398 = vmax.f32 %v397, 0.0
      %v399 = vsub.f32 %v288, 0.75
      %v400 = vmul.f32 %v398, %v399
      %v401 = vmul.f32 %v400, -2.0
      %v402 = vsel %vm394, %v401, -inf
      %vm403 = vcmask 64512
      %v404 = vsel %vm403, %v402, -inf
      %405 = vmax.xlane.f32.xlu0 %v404
      %v406 = vpop.xlane.xlu0 %405
      %v407 = vld [vmem:[#allocation2] sm:$0xff]
      %v408 = vmax.f32 %v407, %v406
      %vm409 = vcmp.eq.f32.partialorder %v408, -inf
      %v410 = vsub.f32 %v407, %v408
      %v411 = vmul.f32 %v410, 1.442695
      %v412 = vpow.pop %v411
      %v413 = vsel %vm409, 0.0, %v412
      %415 = vset.pattern.permute.xlu0 0
      %416 = vperm.xlu0 %415, %v408
      %v417 = vpop.permute.xlu0 %416
      %v419 = vsub.f32 %v402, %v417
      %v420 = vmul.f32 %v419, 1.442695
      %v421 = vpow.pop %v420
      %v422 = vsel %vm403, %v421, 0.0
      %423 = vadd.xlane.f32.xlu0 %v422
      %v424 = vpop.xlane.xlu0 %423
      %v425 = vld [vmem:[#allocation3] sm:$0xff]
      %v426 = vmul.f32 %v413, %v425
      %v427 = vadd.f32 %v426, %v424
      %v428 = vsel %vm409, 0.0, %v427
      %vm429 = vcmask 7168
      %430 = vst.msk [vmem:[#allocation3] sm:$0xff] %vm429, %v428
      %431 = vst.msk [vmem:[#allocation2] sm:$0xff] %vm429, %v408
      %v432 = vadd.f32 %v288, 0.25
      %v433 = vmax.f32 %v432, 0.0
      %v434 = vsub.f32 %v288, 0.25
      %v435 = vmul.f32 %v433, %v434
      %v436 = vmul.f32 %v435, 2.0
      %v437 = vsel %vm396, %v436, -inf
      %v438 = vsel %vm403, %v437, -inf
      %439 = vmax.xlane.f32.xlu0 %v438
      %v440 = vpop.xlane.xlu0 %439
      %v441 = vld [vmem:[#allocation4] sm:$0xff]
      %v442 = vmax.f32 %v441, %v440
      %vm443 = vcmp.eq.f32.partialorder %v442, -inf
      %v444 = vsub.f32 %v441, %v442
      %v445 = vmul.f32 %v444, 1.442695
      %v446 = vpow.pop %v445
      %v447 = vsel %vm443, 0.0, %v446
      %449 = vset.pattern.permute.xlu0 0
      %450 = vperm.xlu0 %449, %v442
      %v451 = vpop.permute.xlu0 %450
      %v453 = vsub.f32 %v437, %v451
      %v454 = vmul.f32 %v453, 1.442695
      %v455 = vpow.pop %v454
      %v456 = vsel %vm403, %v455, 0.0
      %457 = vadd.xlane.f32.xlu0 %v456
      %v458 = vpop.xlane.xlu0 %457
      %v459 = vld [vmem:[#allocation5] sm:$0xff]
      %v460 = vmul.f32 %v447, %v459
      %v461 = vadd.f32 %v460, %v458
      %v462 = vsel %vm443, 0.0, %v461
      %463 = vst.msk [vmem:[#allocation5] sm:$0xff] %vm429, %v462
      %464 = vst.msk [vmem:[#allocation4] sm:$0xff] %vm429, %v442
    $region33: #{tpu_custom_call.1} parent=1 // pred_fallthru
      _
    %p465 = scmp.eq.s32.totalorder %s202, 0
    // Predicated region
    $region34: #{tpu_custom_call.1} parent=1 // pred_check
      %p466 = pneg %p465
    $region35: #{tpu_custom_call.1} parent=1 // pred_check_branch
      %468 = sbr.rel (%p466) target = $region37
    $region36: #{tpu_custom_call.1} parent=1 // pred_region
      %v469 = vld [vmem:[#allocation2] sm:$0xff]
      %v470 = vld [vmem:[#allocation3] sm:$0xff]
      %v471 = vlog2.pop %v470
      %v472 = vmul.f32 %v471, 0.6931472
      %v473 = vadd.f32 %v469, %v472
      %vm474 = vcmask 7168
      %475 = vst.msk [vmem:[%s178] sm:$0xff] %vm474, %v473
      %v476 = vld [vmem:[#allocation4] sm:$0xff]
      %v477 = vld [vmem:[#allocation5] sm:$0xff]
      %v478 = vlog2.pop %v477
      %v479 = vmul.f32 %v478, 0.6931472
      %v480 = vadd.f32 %v476, %v479
      %481 = vst.msk [vmem:[%s190] sm:$0xff] %vm474, %v480
    $region37: #{tpu_custom_call.1} parent=1 // pred_fallthru
      _
    %s482 = ssub.s32 1, 0
    %p483 = scmp.ge.s32.totalorder 0, %s482
    %s484 = ssub.s32 0, 0
    %s485 = scalar_select %p483, %s484, 0
    %p486 = scmp.lt.s32.totalorder %s485, 0
    %s487 = scalar_select %p486, %s485, 0
    %s488 = smul.addr %s487, 8
    %s489 = scalar_lea.vmem %s4, %s488
    %s490 = ssub.s32 1, 0
    %p491 = scmp.ge.s32.totalorder 0, %s490
    %s492 = ssub.s32 0, 0
    %s493 = scalar_select %p491, %s492, 0
    %p494 = scmp.lt.s32.totalorder %s493, 0
    %s495 = scalar_select %p494, %s493, 0
    %s496 = smul.addr %s495, 8
    %s497 = scalar_lea.vmem %s5, %s496
    // Predicated region
    $region38: #{tpu_custom_call.1} parent=1 // pred_check
      _
    $region39: #{tpu_custom_call.1} parent=1 // pred_check_branch
      %499 = sbr.rel (0) target = $region41
    $region40: #{tpu_custom_call.1} parent=1 // pred_region
      %s500 = ssub.s32 1, 0
      %p501 = scmp.ge.s32.totalorder 0, %s500
      %s502 = ssub.s32 0, 0
      %s503 = scalar_select %p501, %s502, 0
    $region41: #{tpu_custom_call.1} parent=1 // pred_fallthru
      _
    // Predicated region
    $region42: #{tpu_custom_call.1} parent=1 // pred_check
      _
    $region43: #{tpu_custom_call.1} parent=1 // pred_check_branch
      %505 = sbr.rel (0) target = $region45
    $region44: #{tpu_custom_call.1} parent=1 // pred_region
      %s506 = ssub.s32 1, 0
      %p507 = scmp.ge.s32.totalorder 0, %s506
      %s508 = ssub.s32 0, 0
      %s509 = scalar_select %p507, %s508, 0
    $region45: #{tpu_custom_call.1} parent=1 // pred_fallthru
      _
    // Predicated region
    $region46: #{tpu_custom_call.1} parent=1 // pred_check
      _
    $region47: #{tpu_custom_call.1} parent=1 // pred_check_branch
      %511 = sbr.rel (0) target = $region49
    $region48: #{tpu_custom_call.1} parent=1 // pred_region
      %s512 = ssub.s32 1, 0
      %p513 = scmp.ge.s32.totalorder 0, %s512
      %s514 = ssub.s32 0, 0
      %s515 = scalar_select %p513, %s514, 0
      %p516 = scmp.lt.s32.totalorder %s515, 0
      %s517 = scalar_select %p516, %s515, 0
      %s518 = smul.addr %s517, 8
      %s519 = scalar_lea.vmem %s4, %s518
    $region49: #{tpu_custom_call.1} parent=1 // pred_fallthru
      _
    // Predicated region
    $region50: #{tpu_custom_call.1} parent=1 // pred_check
      _
    $region51: #{tpu_custom_call.1} parent=1 // pred_check_branch
      %521 = sbr.rel (0) target = $region53
    $region52: #{tpu_custom_call.1} parent=1 // pred_region
      %s522 = ssub.s32 1, 0
      %p523 = scmp.ge.s32.totalorder 0, %s522
      %s524 = ssub.s32 0, 0
      %s525 = scalar_select %p523, %s524, 0
      %p526 = scmp.lt.s32.totalorder %s525, 0
      %s527 = scalar_select %p526, %s525, 0
      %s528 = smul.addr %s527, 8
      %s529 = scalar_lea.vmem %s5, %s528
    $region53: #{tpu_custom_call.1} parent=1 // pred_fallthru
      _
    %530 = vsyncpa [#allocation7], 1

</llo_original>
